<compile_context>
chip_gen: v5e
topology: v5e:2x2
jax: 0.10.0
libtpu: 0.0.40
codegen_flags: <defaults>
</compile_context>

<pallas_src>
import functools

import jax
import jax.numpy as jnp
from jax.experimental import pallas as pl
from jax.experimental.pallas import tpu as pltpu

BN_EPS = 1e-5
LEAKY_SLOPE = 0.2


def _vmem_limit_bytes():
    # Per-generation scoped-VMEM limit: most of 128 MiB on v5e/v6e, most of 64 MiB on
    # v7x; conservative fallback if the query is unavailable.
    try:
        cap = int(pltpu.get_tpu_info().vmem_capacity_bytes)
    except Exception:
        cap = 64 * 1024 * 1024
    cap = max(min(cap, 128 * 1024 * 1024), 32 * 1024 * 1024)
    return int(cap * 0.9)


# -----------------------------------------------------------------------------
# Pass 1: conv (two shifted matmuls on the space-to-depth input) + per-image
# per-channel (sum, sum_sq) partial BatchNorm statistics, one image per grid step.
# -----------------------------------------------------------------------------
def _conv_stats_kernel(z_ref, w_ref, y_ref, stats_ref, *, wout, m_img):
    z = z_ref[...]                                     # (8*C_in, Lz) compute dtype
    # kernel rows kh = {0,1} pair with z columns [0, M), kh = {2,3} with [Wout, Wout+M).
    acc = jnp.dot(w_ref[0], z[:, 0:m_img],
                  preferred_element_type=jnp.float32)
    acc = acc + jnp.dot(w_ref[1], z[:, wout:wout + m_img],
                        preferred_element_type=jnp.float32)
    y_ref[...] = acc.astype(y_ref.dtype)               # bf16/f32 store of y
    # Partial stats from the f32 accumulator (before downcast); two direct stores.
    stats_ref[:, 0:1] = jnp.sum(acc, axis=1, keepdims=True)
    stats_ref[:, 1:2] = jnp.sum(acc * acc, axis=1, keepdims=True)


# -----------------------------------------------------------------------------
# Pass 2: y -> gamma*(y-mean)*rsqrt(var+eps)+beta -> LeakyReLU(0.2), folded into a
# single per-channel scale/shift affine; output aliases the y buffer.
# -----------------------------------------------------------------------------
def _bn_lrelu_kernel(y_ref, scale_ref, shift_ref, out_ref):
    y = y_ref[...].astype(jnp.float32)
    z = y * scale_ref[...] + shift_ref[...]
    out_ref[...] = jnp.where(z >= 0, z, LEAKY_SLOPE * z).astype(out_ref.dtype)


def _spectral_normalize(w, n_iters=20):
    # PyTorch's spectral_norm divides the conv weight by its largest singular value,
    # estimated with power iteration on weight.reshape(C_out, -1).
    # TODO(synk): PyTorch does 1 power-iteration step per forward on a persistent random
    # `u` buffer; here we run a converged deterministic power iteration instead.
    c_out = w.shape[0]
    w_mat = w.reshape(c_out, -1)
    v = jnp.ones((w_mat.shape[1],), w.dtype)
    u = jnp.ones((c_out,), w.dtype)
    for _ in range(n_iters):
        u = w_mat @ v
        u = u / (jnp.linalg.norm(u) + 1e-12)
        v = w_mat.T @ u
        v = v / (jnp.linalg.norm(v) + 1e-12)
    sigma = u @ (w_mat @ v)
    return w / sigma


def _space_to_depth_s2k4(x_nchw):
    """z[n, (dh*4+kw)*C + c, i*Wout + wo] = x_pad[n, c, 2*i + dh, 2*wo + kw].

    Pure pad/strided-slice/stack (no arithmetic, no transpose of the activation);
    same element count as the padded input -> no im2col read amplification.
    """
    N, C, H, W = x_nchw.shape
    assert H % 2 == 0 and W % 2 == 0, "DownBlock expects even spatial dims"
    Hout, Wout = H // 2, W // 2
    Hz = Hout + 1
    xp = jnp.pad(x_nchw, ((0, 0), (0, 0), (1, 1), (1, 1)))
    parts = []
    for dh in range(2):
        for kw in range(4):
            s = jax.lax.slice(
                xp,
                (0, 0, dh, kw),
                (N, C, dh + 2 * (Hz - 1) + 1, kw + 2 * (Wout - 1) + 1),
                (1, 1, 2, 2),
            )  # (N, C, Hz, Wout)
            parts.append(s.reshape(N, C, Hz * Wout))
    z = jnp.stack(parts, axis=1)                       # (N, 8, C, Lz)
    return z.reshape(N, 8 * C, Hz * Wout), (Hout, Wout)


def _fold_weight(w_sn):
    """(C_out, C_in, 4, 4) -> (2, C_out, 8*C_in); slab a holds kernel rows kh = 2a+dh,
    with the contraction index ordered (dh, kw, c) to match _space_to_depth_s2k4."""
    c_out, c_in = w_sn.shape[0], w_sn.shape[1]
    mats = []
    for a in range(2):
        parts = [w_sn[:, :, 2 * a + dh, kw] for dh in range(2) for kw in range(4)]
        mats.append(jnp.stack(parts, axis=1).reshape(c_out, 8 * c_in))
    return jnp.stack(mats, axis=0)


@functools.partial(jax.jit, static_argnames=("compute_dtype",))
def down_block(x_nchw, weight, gamma, beta, *, compute_dtype=jnp.bfloat16):
    """Forward of DownBlock. x_nchw: (N, C_in, H, W); weight: (C_out, C_in, 4, 4).
    Returns (N, C_out, H//2, W//2) in compute_dtype (NCHW, no transposes needed)."""
    N, C_in, H, W = x_nchw.shape
    c_out = weight.shape[0]
    itemsize = jnp.dtype(compute_dtype).itemsize

    w_sn = _spectral_normalize(weight)
    w_t = _fold_weight(w_sn).astype(compute_dtype)     # (2, C_out, 8*C_in)

    z, (Hout, Wout) = _space_to_depth_s2k4(x_nchw)
    z = z.astype(compute_dtype)                        # (N, 8*C_in, Lz)
    K8 = 8 * C_in
    M_img = Hout * Wout
    Lz = z.shape[-1]
    M_total = N * M_img

    vmem_limit = _vmem_limit_bytes()

    # ---- pass 1: per-image conv + partial BN stats ----------------------------------
    kernel1 = functools.partial(_conv_stats_kernel, wout=Wout, m_img=M_img)
    y, stats = pl.pallas_call(
        kernel1,
        out_shape=(
            jax.ShapeDtypeStruct((N, c_out, M_img), compute_dtype),
            jax.ShapeDtypeStruct((N, c_out, 2), jnp.float32),
        ),
        grid=(N,),
        in_specs=[
            pl.BlockSpec((None, K8, Lz), lambda n: (n, 0, 0)),
            pl.BlockSpec((2, c_out, K8), lambda n: (0, 0, 0)),
        ],
        out_specs=(
            pl.BlockSpec((None, c_out, M_img), lambda n: (n, 0, 0)),
            pl.BlockSpec((None, c_out, 2), lambda n: (n, 0, 0)),
        ),
        compiler_params=pltpu.CompilerParams(
            dimension_semantics=("parallel",),
            vmem_limit_bytes=vmem_limit,
        ),
        cost_estimate=pl.CostEstimate(
            flops=2 * M_total * (16 * C_in) * c_out,
            transcendentals=0,
            bytes_accessed=(z.size + w_t.size) * itemsize
                           + N * c_out * M_img * itemsize + N * c_out * 2 * 4,
        ),
    )(z, w_t)

    # ---- global BN statistics (tiny reduction, plain JAX) ---------------------------
    total = jnp.sum(stats, axis=0)                     # (c_out, 2)
    mean = total[:, 0] / M_total
    var = jnp.maximum(total[:, 1] / M_total - mean * mean, 0.0)  # biased (train-mode)
    inv_std = jax.lax.rsqrt(var + BN_EPS)
    scale_vec = gamma * inv_std
    shift_vec = beta - mean * scale_vec
    scale = scale_vec.reshape(c_out, 1).astype(jnp.float32)
    shift = shift_vec.reshape(c_out, 1).astype(jnp.float32)
    # TODO(synk): BatchNorm running_mean/running_var buffers are not updated (fwd only).

    # ---- pass 2: fused normalize + LeakyReLU, writing back into y's buffer ----------
    out = pl.pallas_call(
        _bn_lrelu_kernel,
        out_shape=jax.ShapeDtypeStruct((N, c_out, M_img), compute_dtype),
        grid=(N,),
        in_specs=[
            pl.BlockSpec((None, c_out, M_img), lambda n: (n, 0, 0)),
            pl.BlockSpec((c_out, 1), lambda n: (0, 0)),
            pl.BlockSpec((c_out, 1), lambda n: (0, 0)),
        ],
        out_specs=pl.BlockSpec((None, c_out, M_img), lambda n: (n, 0, 0)),
        input_output_aliases={0: 0},
        compiler_params=pltpu.CompilerParams(
            dimension_semantics=("parallel",),
            vmem_limit_bytes=vmem_limit,
        ),
        cost_estimate=pl.CostEstimate(
            flops=3 * M_total * c_out,
            transcendentals=0,
            bytes_accessed=2 * M_total * c_out * itemsize + 2 * c_out * 4,
        ),
    )(y, scale, shift)

    # Free metadata reshape: (N, C_out, Hout*Wout) -> (N, C_out, Hout, Wout) (NCHW).
    return out.reshape(N, c_out, Hout, Wout)


def _reference(x_nchw, weight, gamma, beta):
    # Pure-JAX reference for the correctness sanity check.
    w_sn = _spectral_normalize(weight)
    y = jax.lax.conv_general_dilated(
        x_nchw, w_sn, window_strides=(2, 2), padding=((1, 1), (1, 1)),
        dimension_numbers=("NCHW", "OIHW", "NCHW"))
    mean = jnp.mean(y, axis=(0, 2, 3), keepdims=True)
    var = jnp.mean(jnp.square(y - mean), axis=(0, 2, 3), keepdims=True)
    y = (y - mean) * jax.lax.rsqrt(var + BN_EPS)
    y = y * gamma.reshape(1, -1, 1, 1) + beta.reshape(1, -1, 1, 1)
    return jnp.where(y >= 0, y, LEAKY_SLOPE * y)


if __name__ == "__main__":
    key = jax.random.PRNGKey(0)
    kx, kw_, kx2, kw2 = jax.random.split(key, 4)

    # ---- config A: small DownBlock-like shapes --------------------------------------
    N, C_in, C_out, H, W = 2, 4, 8, 16, 16
    x = jax.random.normal(kx, (N, C_in, H, W), dtype=jnp.float32)
    fan_in = C_in * 4 * 4
    bound = 1.0 / (fan_in ** 0.5)
    weight = jax.random.uniform(kw_, (C_out, C_in, 4, 4),
                                minval=-bound, maxval=bound, dtype=jnp.float32)
    gamma = jnp.ones((C_out,), jnp.float32)   # BatchNorm2d init: gamma=1, beta=0
    beta = jnp.zeros((C_out,), jnp.float32)

    ref = _reference(x, weight, gamma, beta)

    # f32 compute/storage path: tight numerical check.
    out_f32 = down_block(x, weight, gamma, beta, compute_dtype=jnp.float32)
    jax.block_until_ready(out_f32)
    assert out_f32.shape == (N, C_out, H // 2, W // 2), out_f32.shape
    assert jnp.allclose(out_f32, ref, atol=5e-4, rtol=5e-4), \
        float(jnp.max(jnp.abs(out_f32 - ref)))

    # Default fast path: bf16 matmul operands + bf16 y/out storage (looser tolerance).
    out_bf16 = down_block(x, weight, gamma, beta)
    jax.block_until_ready(out_bf16)
    assert out_bf16.dtype == jnp.bfloat16
    assert jnp.allclose(out_bf16.astype(jnp.float32), ref, atol=6e-2, rtol=6e-2), \
        float(jnp.max(jnp.abs(out_bf16.astype(jnp.float32) - ref)))

    # ---- config B: odd channel counts / larger map (exercises unaligned shapes) -----
    N2, C_in2, C_out2, H2, W2 = 2, 3, 16, 32, 32
    x2 = jax.random.normal(kx2, (N2, C_in2, H2, W2), dtype=jnp.float32)
    bound2 = 1.0 / ((C_in2 * 16) ** 0.5)
    weight2 = jax.random.uniform(kw2, (C_out2, C_in2, 4, 4),
                                 minval=-bound2, maxval=bound2, dtype=jnp.float32)
    gamma2 = jnp.full((C_out2,), 0.8, jnp.float32)
    beta2 = jnp.full((C_out2,), 0.1, jnp.float32)
    ref2 = _reference(x2, weight2, gamma2, beta2)
    out2 = down_block(x2, weight2, gamma2, beta2, compute_dtype=jnp.float32)
    jax.block_until_ready(out2)
    assert out2.shape == (N2, C_out2, H2 // 2, W2 // 2), out2.shape
    assert jnp.allclose(out2, ref2, atol=5e-4, rtol=5e-4), \
        float(jnp.max(jnp.abs(out2 - ref2)))

    print("KERNEL_OK")
</pallas_src>

<mosaic_0001>
module attributes {stable_mosaic.version = 11 : i64} {
  func.func @_bn_lrelu_kernel(%arg0: i32, %arg1: memref<1x8x64xf32, #tpu.memory_space<vmem>>, %arg2: memref<8x1xf32, #tpu.memory_space<vmem>>, %arg3: memref<8x1xf32, #tpu.memory_space<vmem>>, %arg4: memref<1x8x64xf32, #tpu.memory_space<vmem>>) attributes {dimension_semantics = [#tpu.dimension_semantics<parallel>], iteration_bounds = array<i64: 2>, scalar_prefetch = 0 : i64, scratch_operands = 0 : i64, tpu.core_type = #tpu.core_type<tc>, window_params = [{transform_indices = @transform_0, window_bounds = array<i64: 1, 8, 64>}, {pipeline_mode = #tpu.pipeline_mode<synchronous>, transform_indices = @transform_1, window_bounds = array<i64: 8, 1>}, {pipeline_mode = #tpu.pipeline_mode<synchronous>, transform_indices = @transform_2, window_bounds = array<i64: 8, 1>}, {transform_indices = @transform_3, window_bounds = array<i64: 1, 8, 64>}]} {
    %c0 = arith.constant 0 : index
    %c0_0 = arith.constant 0 : index
    %c0_1 = arith.constant 0 : index
    %0 = vector.load %arg1[%c0, %c0_0, %c0_1] : memref<1x8x64xf32, #tpu.memory_space<vmem>>, vector<1x8x64xf32>
    %1 = vector.shape_cast %0 : vector<1x8x64xf32> to vector<8x64xf32>
    %c0_2 = arith.constant 0 : index
    %c0_3 = arith.constant 0 : index
    %2 = vector.load %arg2[%c0_2, %c0_3] : memref<8x1xf32, #tpu.memory_space<vmem>>, vector<8x1xf32>
    %3 = vector.broadcast %2 : vector<8x1xf32> to vector<8x64xf32>
    %4 = arith.mulf %1, %3 : vector<8x64xf32>
    %c0_4 = arith.constant 0 : index
    %c0_5 = arith.constant 0 : index
    %5 = vector.load %arg3[%c0_4, %c0_5] : memref<8x1xf32, #tpu.memory_space<vmem>>, vector<8x1xf32>
    %6 = vector.broadcast %5 : vector<8x1xf32> to vector<8x64xf32>
    %7 = arith.addf %4, %6 : vector<8x64xf32>
    %cst = arith.constant 0.000000e+00 : f32
    %8 = vector.broadcast %cst : f32 to vector<8x64xf32>
    %9 = arith.cmpf oge, %7, %8 : vector<8x64xf32>
    %cst_6 = arith.constant 2.000000e-01 : f32
    %10 = vector.broadcast %cst_6 : f32 to vector<8x64xf32>
    %11 = arith.mulf %10, %7 : vector<8x64xf32>
    %12 = arith.select %9, %7, %11 : vector<8x64xi1>, vector<8x64xf32>
    %c0_7 = arith.constant 0 : index
    %c0_8 = arith.constant 0 : index
    %c0_9 = arith.constant 0 : index
    %13 = vector.load %arg4[%c0_7, %c0_8, %c0_9] : memref<1x8x64xf32, #tpu.memory_space<vmem>>, vector<1x8x64xf32>
    %14 = vector.shape_cast %13 : vector<1x8x64xf32> to vector<8x64xf32>
    %15 = vector.shape_cast %12 : vector<8x64xf32> to vector<1x8x64xf32>
    tpu.vector_store %arg4[%c0_7, %c0_8, %c0_9], %15 {strides = array<i32>} : memref<1x8x64xf32, #tpu.memory_space<vmem>>, vector<1x8x64xf32>,
    return
  }
  func.func @transform_0(%arg0: i32) -> (i32, i32, i32) {
    %c0_i32 = arith.constant 0 : i32
    %c0_i32_0 = arith.constant 0 : i32
    %c0_i32_1 = arith.constant 0 : i32
    return %arg0, %c0_i32, %c0_i32_0 : i32, i32, i32
  }
  func.func @transform_1(%arg0: i32) -> (i32, i32) {
    %c0_i32 = arith.constant 0 : i32
    %c0_i32_0 = arith.constant 0 : i32
    %c0_i32_1 = arith.constant 0 : i32
    return %c0_i32, %c0_i32_0 : i32, i32
  }
  func.func @transform_2(%arg0: i32) -> (i32, i32) {
    %c0_i32 = arith.constant 0 : i32
    %c0_i32_0 = arith.constant 0 : i32
    %c0_i32_1 = arith.constant 0 : i32
    return %c0_i32, %c0_i32_0 : i32, i32
  }
  func.func @transform_3(%arg0: i32) -> (i32, i32, i32) {
    %c0_i32 = arith.constant 0 : i32
    %c0_i32_0 = arith.constant 0 : i32
    %c0_i32_1 = arith.constant 0 : i32
    return %arg0, %c0_i32, %c0_i32_0 : i32, i32, i32
  }
}

module attributes {stable_mosaic.version = 11 : i64} {
  func.func @_conv_stats_kernel(%arg0: i32, %arg1: memref<1x32x72xf32, #tpu.memory_space<vmem>>, %arg2: memref<2x8x32xf32, #tpu.memory_space<vmem>>, %arg3: memref<1x8x64xf32, #tpu.memory_space<vmem>>, %arg4: memref<1x8x2xf32, #tpu.memory_space<vmem>>) attributes {dimension_semantics = [#tpu.dimension_semantics<parallel>], iteration_bounds = array<i64: 2>, scalar_prefetch = 0 : i64, scratch_operands = 0 : i64, tpu.core_type = #tpu.core_type<tc>, window_params = [{transform_indices = @transform_0, window_bounds = array<i64: 1, 32, 72>}, {pipeline_mode = #tpu.pipeline_mode<synchronous>, transform_indices = @transform_1, window_bounds = array<i64: 2, 8, 32>}, {transform_indices = @transform_2, window_bounds = array<i64: 1, 8, 64>}, {transform_indices = @transform_3, window_bounds = array<i64: 1, 8, 2>}]} {
    %c0 = arith.constant 0 : index
    %c0_0 = arith.constant 0 : index
    %c0_1 = arith.constant 0 : index
    %0 = vector.load %arg1[%c0, %c0_0, %c0_1] : memref<1x32x72xf32, #tpu.memory_space<vmem>>, vector<1x32x72xf32>
    %1 = vector.shape_cast %0 : vector<1x32x72xf32> to vector<32x72xf32>
    %c0_2 = arith.constant 0 : index
    %c0_3 = arith.constant 0 : index
    %c0_4 = arith.constant 0 : index
    %2 = vector.load %arg2[%c0_2, %c0_3, %c0_4] : memref<2x8x32xf32, #tpu.memory_space<vmem>>, vector<1x8x32xf32>
    %3 = vector.shape_cast %2 : vector<1x8x32xf32> to vector<8x32xf32>
    %4 = vector.extract_strided_slice %1 {offsets = [0, 0], sizes = [32, 64], strides = [1, 1]} : vector<32x72xf32> to vector<32x64xf32>
    %cst = arith.constant dense<0.000000e+00> : vector<8x64xf32>
    %5 = tpu.matmul %3, %4, %cst {dimension_numbers = #tpu.dot_dimension_numbers<[1], [0], [0], [1], [0, 0, 1, 1], [], []>} : vector<8x32xf32>, vector<32x64xf32>, vector<8x64xf32> -> vector<8x64xf32>
    %c1 = arith.constant 1 : index
    %c0_5 = arith.constant 0 : index
    %c0_6 = arith.constant 0 : index
    %6 = vector.load %arg2[%c1, %c0_5, %c0_6] : memref<2x8x32xf32, #tpu.memory_space<vmem>>, vector<1x8x32xf32>
    %7 = vector.shape_cast %6 : vector<1x8x32xf32> to vector<8x32xf32>
    %8 = vector.extract_strided_slice %1 {offsets = [0, 8], sizes = [32, 64], strides = [1, 1]} : vector<32x72xf32> to vector<32x64xf32>
    %cst_7 = arith.constant dense<0.000000e+00> : vector<8x64xf32>
    %9 = tpu.matmul %7, %8, %cst_7 {dimension_numbers = #tpu.dot_dimension_numbers<[1], [0], [0], [1], [0, 0, 1, 1], [], []>} : vector<8x32xf32>, vector<32x64xf32>, vector<8x64xf32> -> vector<8x64xf32>
    %10 = arith.addf %5, %9 : vector<8x64xf32>
    %c0_8 = arith.constant 0 : index
    %c0_9 = arith.constant 0 : index
    %c0_10 = arith.constant 0 : index
    %11 = vector.load %arg3[%c0_8, %c0_9, %c0_10] : memref<1x8x64xf32, #tpu.memory_space<vmem>>, vector<1x8x64xf32>
    %12 = vector.shape_cast %11 : vector<1x8x64xf32> to vector<8x64xf32>
    %13 = vector.shape_cast %10 : vector<8x64xf32> to vector<1x8x64xf32>
    tpu.vector_store %arg3[%c0_8, %c0_9, %c0_10], %13 {strides = array<i32>} : memref<1x8x64xf32, #tpu.memory_space<vmem>>, vector<1x8x64xf32>,
    %cst_11 = arith.constant dense<0.000000e+00> : vector<8xf32>
    %14 = vector.multi_reduction <add>, %10, %cst_11 [1] : vector<8x64xf32> to vector<8xf32>
    %15 = vector.shape_cast %14 : vector<8xf32> to vector<8x1xf32>
    %c0_12 = arith.constant 0 : index
    %c0_13 = arith.constant 0 : index
    %c0_14 = arith.constant 0 : index
    %16 = vector.load %arg4[%c0_12, %c0_13, %c0_14] : memref<1x8x2xf32, #tpu.memory_space<vmem>>, vector<1x8x1xf32>
    %17 = vector.shape_cast %16 : vector<1x8x1xf32> to vector<8x1xf32>
    %18 = vector.shape_cast %15 : vector<8x1xf32> to vector<1x8x1xf32>
    tpu.vector_store %arg4[%c0_12, %c0_13, %c0_14], %18 {strides = array<i32>} : memref<1x8x2xf32, #tpu.memory_space<vmem>>, vector<1x8x1xf32>,
    %19 = arith.mulf %10, %10 : vector<8x64xf32>
    %cst_15 = arith.constant dense<0.000000e+00> : vector<8xf32>
    %20 = vector.multi_reduction <add>, %19, %cst_15 [1] : vector<8x64xf32> to vector<8xf32>
    %21 = vector.shape_cast %20 : vector<8xf32> to vector<8x1xf32>
    %c0_16 = arith.constant 0 : index
    %c0_17 = arith.constant 0 : index
    %c1_18 = arith.constant 1 : index
    %22 = vector.load %arg4[%c0_16, %c0_17, %c1_18] : memref<1x8x2xf32, #tpu.memory_space<vmem>>, vector<1x8x1xf32>
    %23 = vector.shape_cast %22 : vector<1x8x1xf32> to vector<8x1xf32>
    %24 = vector.shape_cast %21 : vector<8x1xf32> to vector<1x8x1xf32>
    tpu.vector_store %arg4[%c0_16, %c0_17, %c1_18], %24 {strides = array<i32>} : memref<1x8x2xf32, #tpu.memory_space<vmem>>, vector<1x8x1xf32>,
    return
  }
  func.func @transform_0(%arg0: i32) -> (i32, i32, i32) {
    %c0_i32 = arith.constant 0 : i32
    %c0_i32_0 = arith.constant 0 : i32
    %c0_i32_1 = arith.constant 0 : i32
    return %arg0, %c0_i32, %c0_i32_0 : i32, i32, i32
  }
  func.func @transform_1(%arg0: i32) -> (i32, i32, i32) {
    %c0_i32 = arith.constant 0 : i32
    %c0_i32_0 = arith.constant 0 : i32
    %c0_i32_1 = arith.constant 0 : i32
    %c0_i32_2 = arith.constant 0 : i32
    return %c0_i32, %c0_i32_0, %c0_i32_1 : i32, i32, i32
  }
  func.func @transform_2(%arg0: i32) -> (i32, i32, i32) {
    %c0_i32 = arith.constant 0 : i32
    %c0_i32_0 = arith.constant 0 : i32
    %c0_i32_1 = arith.constant 0 : i32
    return %arg0, %c0_i32, %c0_i32_0 : i32, i32, i32
  }
  func.func @transform_3(%arg0: i32) -> (i32, i32, i32) {
    %c0_i32 = arith.constant 0 : i32
    %c0_i32_0 = arith.constant 0 : i32
    %c0_i32_1 = arith.constant 0 : i32
    return %arg0, %c0_i32, %c0_i32_0 : i32, i32, i32
  }
}

</mosaic_0001>

<llo_original>
// kernel: down_block.2
$region0: #{down_block.2}
  #allocation0 [shape = 'u32[]', space=smem, size = 0x4, offset = 0x4, fixed_abs, tag = 'smem constant byte address 0x4 - core index']
  #allocation1 [shape = 'u32[72,128]{1,0:T(1,128)}', space=vmem, size = 0x9000, scoped, tag = 'internal scratch']
  %s0 = inlined_call_operand.vmem [shape: f32[2,32,72], index: 0, kind: input, shape index: {}]
  %s1 = inlined_call_operand.vmem [shape: f32[2,8,32], index: 1, kind: input, shape index: {}]
  %s2 = inlined_call_operand.vmem [shape: f32[2,8,64], index: 2, kind: output, shape index: {0}]
  %s3 = inlined_call_operand.vmem [shape: f32[2,8,2], index: 3, kind: output, shape index: {1}]
  %4 = xla_tuple %s2, %s3
  %s5 = sld [smem:[#allocation0]]
  $region49: #{down_block.2} parent=0
    _
  %s7 = ssub.s32 1, %s5
  %s8 = scalar_select 0, %s7, %s5
  loop: start=0, step=1, limit=4
  $region2: #{down_block.2} parent=0 // loop_pre_header
    _
  $region3: #{down_block.2} parent=0 // loop_header
    %s10 = sphi 0, %s14
    %p11 = scmp.ge.s32.totalorder %s10, 4
    %s20 = sphi 0, %s22
    %s23 = sphi 0, %s20
    %s24 = sphi 0, %s23
    %s40 = sphi 0, %s24
    %s44 = sphi 0, %s44
    %s46 = sphi 0, %s44
    %s47 = sphi 0, %s46
    %s61 = sphi 0, %s47
    %s67 = sphi 0, %s69
    %s70 = sphi 0, %s67
    %s71 = sphi 0, %s70
    %s87 = sphi 0, %s71
    %s93 = sphi 0, %s95
    %s96 = sphi 0, %s93
    %s97 = sphi 0, %s96
    %s113 = sphi 0, %s97
  $region4: #{down_block.2} parent=0 // loop_header_branch
    %13 = sbr.rel (%p11) target = $region8
  $region5: #{down_block.2} parent=0 // loop_body
    %s15 = ssub.s32 %s10, 1
    %s16 = ssub.s32 %s10, 2
    %s17 = sadd.s32 %s10, 1
    %s18 = ssub.s32 %s10, %s17
    %p19 = scmp.eq.s32.totalorder %s18, 0
    %s21 = sadd.s32 %s20, 1
    %s22 = scalar_select %p19, %s20, %s21
    %p25 = pneg %p19
    %p26 = scmp.eq.s32.totalorder %s10, 1
    %p27 = por %p25, %p26
    %p28 = scmp.ne.s32.totalorder %s20, %s23
    %p29 = scmp.eq.s32.totalorder %s10, 0
    %p30 = por %p28, %p29
    %p31 = scmp.ne.s32.totalorder %s20, %s23
    %p32 = scmp.eq.s32.totalorder %s15, 1
    %p33 = por %p31, %p32
    %p34 = scmp.ne.s32.totalorder %s23, %s24
    %p35 = scmp.eq.s32.totalorder %s15, 0
    %p36 = por %p34, %p35
    %p37 = scmp.ne.s32.totalorder %s23, %s24
    %p38 = scmp.eq.s32.totalorder %s16, 1
    %p39 = por %p37, %p38
    %p41 = scmp.ne.s32.totalorder %s24, %s40
    %p42 = scmp.eq.s32.totalorder %s16, 0
    %p43 = por %p41, %p42
    %s45 = sadd.s32 %s44, 1
    %p48 = scmp.eq.s32.totalorder %s10, 1
    %p49 = scmp.ne.s32.totalorder %s44, %s46
    %p50 = scmp.eq.s32.totalorder %s10, 0
    %p51 = por %p49, %p50
    %p52 = scmp.ne.s32.totalorder %s44, %s46
    %p53 = scmp.eq.s32.totalorder %s15, 1
    %p54 = por %p52, %p53
    %p55 = scmp.ne.s32.totalorder %s46, %s47
    %p56 = scmp.eq.s32.totalorder %s15, 0
    %p57 = por %p55, %p56
    %p58 = scmp.ne.s32.totalorder %s46, %s47
    %p59 = scmp.eq.s32.totalorder %s16, 1
    %p60 = por %p58, %p59
    %p62 = scmp.ne.s32.totalorder %s47, %s61
    %p63 = scmp.eq.s32.totalorder %s16, 0
    %p64 = por %p62, %p63
    %s65 = ssub.s32 %s10, %s17
    %p66 = scmp.eq.s32.totalorder %s65, 0
    %s68 = sadd.s32 %s67, 1
    %s69 = scalar_select %p66, %s67, %s68
    %p72 = pneg %p66
    %p73 = scmp.eq.s32.totalorder %s10, 1
    %p74 = por %p72, %p73
    %p75 = scmp.ne.s32.totalorder %s67, %s70
    %p76 = scmp.eq.s32.totalorder %s10, 0
    %p77 = por %p75, %p76
    %p78 = scmp.ne.s32.totalorder %s67, %s70
    %p79 = scmp.eq.s32.totalorder %s15, 1
    %p80 = por %p78, %p79
    %p81 = scmp.ne.s32.totalorder %s70, %s71
    %p82 = scmp.eq.s32.totalorder %s15, 0
    %p83 = por %p81, %p82
    %p84 = scmp.ne.s32.totalorder %s70, %s71
    %p85 = scmp.eq.s32.totalorder %s16, 1
    %p86 = por %p84, %p85
    %p88 = scmp.ne.s32.totalorder %s71, %s87
    %p89 = scmp.eq.s32.totalorder %s16, 0
    %p90 = por %p88, %p89
    %s91 = ssub.s32 %s10, %s17
    %p92 = scmp.eq.s32.totalorder %s91, 0
    %s94 = sadd.s32 %s93, 1
    %s95 = scalar_select %p92, %s93, %s94
    %p98 = pneg %p92
    %p99 = scmp.eq.s32.totalorder %s10, 1
    %p100 = por %p98, %p99
    %p101 = scmp.ne.s32.totalorder %s93, %s96
    %p102 = scmp.eq.s32.totalorder %s10, 0
    %p103 = por %p101, %p102
    %p104 = scmp.ne.s32.totalorder %s93, %s96
    %p105 = scmp.eq.s32.totalorder %s15, 1
    %p106 = por %p104, %p105
    %p107 = scmp.ne.s32.totalorder %s96, %s97
    %p108 = scmp.eq.s32.totalorder %s15, 0
    %p109 = por %p107, %p108
    %p110 = scmp.ne.s32.totalorder %s96, %s97
    %p111 = scmp.eq.s32.totalorder %s16, 1
    %p112 = por %p110, %p111
    %p114 = scmp.ne.s32.totalorder %s97, %s113
    %p115 = scmp.eq.s32.totalorder %s16, 0
    %p116 = por %p114, %p115
    %p117 = scmp.le.s32.totalorder 1, %s10
    %p118 = scmp.lt.s32.totalorder %s10, 3
    %p119 = pnand %p117, %p118
    %p120 = pneg %p119
    // Predicated region
    $region9: #{down_block.2} parent=5 // pred_check
      _
    $region10: #{down_block.2} parent=5 // pred_check_branch
      %122 = sbr.rel (%p119) target = $region12
    $region11: #{down_block.2} parent=5 // pred_region
      %s123 = ssub.s32 %s10, 1
      // Predicated region
      $region13: #{down_block.2} parent=11 // pred_check
        %p124 = pneg %p57
      $region14: #{down_block.2} parent=11 // pred_check_branch
        %126 = sbr.rel (%p124) target = $region16
      $region15: #{down_block.2} parent=11 // pred_region
        _
      $region16: #{down_block.2} parent=11 // pred_fallthru
        _
    $region12: #{down_block.2} parent=5 // pred_fallthru
      _
    %p127 = scmp.lt.s32.totalorder %s10, 2
    // Predicated region
    $region17: #{down_block.2} parent=5 // pred_check
      %p128 = pneg %p127
    $region18: #{down_block.2} parent=5 // pred_check_branch
      %130 = sbr.rel (%p128) target = $region20
    $region19: #{down_block.2} parent=5 // pred_region
      // Predicated region
      $region21: #{down_block.2} parent=19 // pred_check
        %p131 = pneg %p30
      $region22: #{down_block.2} parent=19 // pred_check_branch
        %133 = sbr.rel (%p131) target = $region24
      $region23: #{down_block.2} parent=19 // pred_region
        %p134 = scmp.lt.s32.totalorder %s10, 1
        %s135 = scalar_select %p134, %s10, 1
        %s136 = smul.addr %s135, 4
        %s137 = smul.addr %s136, 8
        %s138 = scalar_lea.vmem %s0, %s137
      $region24: #{down_block.2} parent=19 // pred_fallthru
        _
    $region20: #{down_block.2} parent=5 // pred_fallthru
      _
    %p139 = scmp.le.s32.totalorder 1, %s10
    %p140 = scmp.lt.s32.totalorder %s10, 3
    %p141 = pnand %p139, %p140
    %p142 = pneg %p141
    // Predicated region
    $region25: #{down_block.2} parent=5 // pred_check
      _
    $region26: #{down_block.2} parent=5 // pred_check_branch
      %144 = sbr.rel (%p141) target = $region28
    $region27: #{down_block.2} parent=5 // pred_region
      %s145 = ssub.s32 %s10, 1
      %p146 = scmp.lt.s32.totalorder %s15, 1
      %s147 = scalar_select %p146, %s15, 1
      %s148 = smul.addr %s147, 4
      %s149 = smul.addr %s148, 8
      %s150 = scalar_lea.vmem %s0, %s149
      %p151 = pneg %p36
      %p152 = pneg %p33
      %p153 = pneg %p57
      %p154 = pneg %p54
      %p155 = pneg %p83
      %p156 = pneg %p80
      %p157 = scmp.lt.s32.totalorder %s15, 1
      %s158 = scalar_select %p157, %s15, 1
      %s159 = smul.addr %s158, 8
      %s160 = scalar_lea.vmem %s2, %s159
      %p161 = pneg %p109
      %p162 = pneg %p106
      %p163 = scmp.lt.s32.totalorder %s15, 1
      %s164 = scalar_select %p163, %s15, 1
      %s165 = smul.addr %s164, 8
      %s166 = scalar_lea.vmem %s3, %s165
      %p167 = scmp.lt.s32.totalorder %s15, 1
      %s168 = scalar_select %p167, %s15, 1
      %s169 = smul.addr %s168, 4
      %s170 = smul.addr %s169, 8
      %s171 = scalar_lea.vmem %s0, %s170
      %p172 = scmp.lt.s32.totalorder %s15, 1
      %s173 = scalar_select %p172, %s15, 1
      %s174 = smul.addr %s173, 8
      %s175 = scalar_lea.vmem %s2, %s174
      %p176 = scmp.lt.s32.totalorder %s15, 1
      %s177 = scalar_select %p176, %s15, 1
      %s178 = smul.addr %s177, 8
      %s179 = scalar_lea.vmem %s3, %s178
      %v180 = vld [vmem:[%s171] sm:$0xff]
      %v181 = vld [vmem:[%s171 + $0x8] sm:$0xff]
      %v182 = vld [vmem:[%s171 + $0x10] sm:$0xff]
      %v183 = vld [vmem:[%s171 + $0x18] sm:$0xff]
      %v184 = vld [vmem:[%s1] sm:$0xff]
      %s185 = scalar_lea.vmem %s1, 8
      %v186 = vld [vmem:[%s185] sm:$0xff]
      %191 = vrot.lane.b32.xlu0 %v180, 120
      %v192 = vpop.permute.xlu0 %191
      %193 = vrot.lane.b32.xlu0 %v181, 120
      %v194 = vpop.permute.xlu0 %193
      %195 = vrot.lane.b32.xlu0 %v182, 120
      %v196 = vpop.permute.xlu0 %195
      %197 = vrot.lane.b32.xlu0 %v183, 120
      %v198 = vpop.permute.xlu0 %197
      %vm203 = vcmask 261120
      %v205 = vsel %vm203, %v186, 0
      %207 = vmatpush.msra.mxu0 0.0
      %208 = vmatpush.msra.mxu0 0.0
      %209 = vmatpush.msra.mxu0 0.0
      %210 = vmatpush.msra.mxu0 0.0
      %211 = vmatpush.msra.mxu0 0.0
      %212 = vmatpush.msra.mxu0 0.0
      %213 = vmatpush.msra.mxu0 0.0
      %214 = vmatpush.msra.mxu0 0.0
      %215 = vmatpush.msra.mxu0 0.0
      %216 = vmatpush.msra.mxu0 0.0
      %217 = vmatpush.msra.mxu0 0.0
      %218 = vmatpush.msra.mxu0 0.0
      %219 = vmatpush.msra.mxu0 %v198
      %220 = vmatpush.msra.mxu0 %v196
      %221 = vmatpush.msra.mxu0 %v194
      %222 = vmatpush.msra.mxu0 %v192
      %223 = vmatmul.f32.gmra.mxu0 %v205
      %v224 = vpop.f32.mrf.mxu0
      %v225 = vadd.f32 0.0, %v224
      %226 = vdwg.mxu0
      %v228 = vsel %vm203, %v184, 0
      %230 = vmatpush.msra.mxu0 0.0
      %231 = vmatpush.msra.mxu0 0.0
      %232 = vmatpush.msra.mxu0 0.0
      %233 = vmatpush.msra.mxu0 0.0
      %234 = vmatpush.msra.mxu0 0.0
      %235 = vmatpush.msra.mxu0 0.0
      %236 = vmatpush.msra.mxu0 0.0
      %237 = vmatpush.msra.mxu0 0.0
      %238 = vmatpush.msra.mxu0 0.0
      %239 = vmatpush.msra.mxu0 0.0
      %240 = vmatpush.msra.mxu0 0.0
      %241 = vmatpush.msra.mxu0 0.0
      %242 = vmatpush.msra.mxu0 %v183
      %243 = vmatpush.msra.mxu0 %v182
      %244 = vmatpush.msra.mxu0 %v181
      %245 = vmatpush.msra.mxu0 %v180
      %246 = vmatmul.f32.gmra.mxu0 %v228
      %v247 = vpop.f32.mrf.mxu0
      %v248 = vadd.f32 %v225, %v247
      %249 = vdwg.mxu0
      %vm250 = vcmask 523264
      %251 = vst.msk [vmem:[%s175] sm:$0xff] %vm250, %v248
      %v252 = vsel %vm250, %v248, 0.0
      %253 = vadd.xlane.f32.xlu0 %v252
      %v254 = vpop.xlane.xlu0 %253
      %vm255 = vcmask 7168
      %256 = vst.msk [vmem:[%s179] sm:$0xff] %vm255, %v254
      %v257 = vmul.f32 %v248, %v248
      %v258 = vsel %vm250, %v257, 0.0
      %259 = vadd.xlane.f32.xlu0 %v258
      %v260 = vpop.xlane.xlu0 %259
      %vm261 = vcmask 15368
      %262 = vst.msk [vmem:[%s179] sm:$0xff] %vm261, %v260
      %p263 = scmp.lt.s32.totalorder %s15, 1
      %s264 = scalar_select %p263, %s15, 1
      %s265 = smul.addr %s264, 8
      %s266 = scalar_lea.vmem %s2, %s265
      %p267 = scmp.lt.s32.totalorder %s15, 1
      %s268 = scalar_select %p267, %s15, 1
      %s269 = smul.addr %s268, 8
      %s270 = scalar_lea.vmem %s3, %s269
      // Predicated region
      $region29: #{down_block.2} parent=27 // pred_check
        %p271 = pneg %p80
      $region30: #{down_block.2} parent=27 // pred_check_branch
        %273 = sbr.rel (%p271) target = $region32
      $region31: #{down_block.2} parent=27 // pred_region
        _
      $region32: #{down_block.2} parent=27 // pred_fallthru
        _
      // Predicated region
      $region33: #{down_block.2} parent=27 // pred_check
        %p274 = pneg %p106
      $region34: #{down_block.2} parent=27 // pred_check_branch
        %276 = sbr.rel (%p274) target = $region36
      $region35: #{down_block.2} parent=27 // pred_region
        _
      $region36: #{down_block.2} parent=27 // pred_fallthru
        _
    $region28: #{down_block.2} parent=5 // pred_fallthru
      _
    %p277 = scmp.le.s32.totalorder 2, %s10
    // Predicated region
    $region37: #{down_block.2} parent=5 // pred_check
      %p278 = pneg %p277
    $region38: #{down_block.2} parent=5 // pred_check_branch
      %280 = sbr.rel (%p278) target = $region40
    $region39: #{down_block.2} parent=5 // pred_region
      %s281 = ssub.s32 %s10, 2
      // Predicated region
      $region41: #{down_block.2} parent=39 // pred_check
        %p282 = pneg %p86
      $region42: #{down_block.2} parent=39 // pred_check_branch
        %284 = sbr.rel (%p282) target = $region44
      $region43: #{down_block.2} parent=39 // pred_region
        %p285 = scmp.lt.s32.totalorder %s16, 1
        %s286 = scalar_select %p285, %s16, 1
        %s287 = smul.addr %s286, 8
        %s288 = scalar_lea.vmem %s2, %s287
      $region44: #{down_block.2} parent=39 // pred_fallthru
        _
      // Predicated region
      $region45: #{down_block.2} parent=39 // pred_check
        %p289 = pneg %p112
      $region46: #{down_block.2} parent=39 // pred_check_branch
        %291 = sbr.rel (%p289) target = $region48
      $region47: #{down_block.2} parent=39 // pred_region
        %p292 = scmp.lt.s32.totalorder %s16, 1
        %s293 = scalar_select %p292, %s16, 1
        %s294 = smul.addr %s293, 8
        %s295 = scalar_lea.vmem %s3, %s294
      $region48: #{down_block.2} parent=39 // pred_fallthru
        _
    $region40: #{down_block.2} parent=5 // pred_fallthru
      _
  $region6: #{down_block.2} parent=0 // loop_footer
    %s14 = sadd.s32 1, %s10
  $region7: #{down_block.2} parent=0 // loop_footer_branch
    %9 = sbr.rel target = $region3
  $region8: #{down_block.2} parent=0 // loop_exit
    _

// kernel: down_block.3
$region0: #{down_block.3}
  #allocation0 [shape = 'u32[]', space=smem, size = 0x4, offset = 0x4, fixed_abs, tag = 'smem constant byte address 0x4 - core index']
  #allocation1 [shape = 'u32[72,128]{1,0:T(1,128)}', space=vmem, size = 0x9000, scoped, tag = 'internal scratch']
  %s0 = inlined_call_operand.vmem [shape: f32[2,8,64], index: 0, kind: input, shape index: {}, may-alias: {0,3}]
  %s1 = inlined_call_operand.vmem [shape: f32[8,1], index: 1, kind: input, shape index: {}]
  %s2 = inlined_call_operand.vmem [shape: f32[8,1], index: 2, kind: input, shape index: {}]
  %s3 = inlined_call_operand.vmem [shape: f32[2,8,64], index: 3, kind: output, shape index: {}, may-alias: {0,3}]
  %s4 = sld [smem:[#allocation0]]
  $region45: #{down_block.3} parent=0
    _
  %s6 = ssub.s32 1, %s4
  %s7 = scalar_select 0, %s6, %s4
  loop: start=0, step=1, limit=4
  $region2: #{down_block.3} parent=0 // loop_pre_header
    _
  $region3: #{down_block.3} parent=0 // loop_header
    %s9 = sphi 0, %s13
    %p10 = scmp.ge.s32.totalorder %s9, 4
    %s19 = sphi 0, %s21
    %s22 = sphi 0, %s19
    %s23 = sphi 0, %s22
    %s39 = sphi 0, %s23
    %s43 = sphi 0, %s43
    %s45 = sphi 0, %s43
    %s46 = sphi 0, %s45
    %s60 = sphi 0, %s46
    %s64 = sphi 0, %s64
    %s66 = sphi 0, %s64
    %s67 = sphi 0, %s66
    %s81 = sphi 0, %s67
    %s87 = sphi 0, %s89
    %s90 = sphi 0, %s87
    %s91 = sphi 0, %s90
    %s107 = sphi 0, %s91
  $region4: #{down_block.3} parent=0 // loop_header_branch
    %12 = sbr.rel (%p10) target = $region8
  $region5: #{down_block.3} parent=0 // loop_body
    %s14 = ssub.s32 %s9, 1
    %s15 = ssub.s32 %s9, 2
    %s16 = sadd.s32 %s9, 1
    %s17 = ssub.s32 %s9, %s16
    %p18 = scmp.eq.s32.totalorder %s17, 0
    %s20 = sadd.s32 %s19, 1
    %s21 = scalar_select %p18, %s19, %s20
    %p24 = pneg %p18
    %p25 = scmp.eq.s32.totalorder %s9, 1
    %p26 = por %p24, %p25
    %p27 = scmp.ne.s32.totalorder %s19, %s22
    %p28 = scmp.eq.s32.totalorder %s9, 0
    %p29 = por %p27, %p28
    %p30 = scmp.ne.s32.totalorder %s19, %s22
    %p31 = scmp.eq.s32.totalorder %s14, 1
    %p32 = por %p30, %p31
    %p33 = scmp.ne.s32.totalorder %s22, %s23
    %p34 = scmp.eq.s32.totalorder %s14, 0
    %p35 = por %p33, %p34
    %p36 = scmp.ne.s32.totalorder %s22, %s23
    %p37 = scmp.eq.s32.totalorder %s15, 1
    %p38 = por %p36, %p37
    %p40 = scmp.ne.s32.totalorder %s23, %s39
    %p41 = scmp.eq.s32.totalorder %s15, 0
    %p42 = por %p40, %p41
    %s44 = sadd.s32 %s43, 1
    %p47 = scmp.eq.s32.totalorder %s9, 1
    %p48 = scmp.ne.s32.totalorder %s43, %s45
    %p49 = scmp.eq.s32.totalorder %s9, 0
    %p50 = por %p48, %p49
    %p51 = scmp.ne.s32.totalorder %s43, %s45
    %p52 = scmp.eq.s32.totalorder %s14, 1
    %p53 = por %p51, %p52
    %p54 = scmp.ne.s32.totalorder %s45, %s46
    %p55 = scmp.eq.s32.totalorder %s14, 0
    %p56 = por %p54, %p55
    %p57 = scmp.ne.s32.totalorder %s45, %s46
    %p58 = scmp.eq.s32.totalorder %s15, 1
    %p59 = por %p57, %p58
    %p61 = scmp.ne.s32.totalorder %s46, %s60
    %p62 = scmp.eq.s32.totalorder %s15, 0
    %p63 = por %p61, %p62
    %s65 = sadd.s32 %s64, 1
    %p68 = scmp.eq.s32.totalorder %s9, 1
    %p69 = scmp.ne.s32.totalorder %s64, %s66
    %p70 = scmp.eq.s32.totalorder %s9, 0
    %p71 = por %p69, %p70
    %p72 = scmp.ne.s32.totalorder %s64, %s66
    %p73 = scmp.eq.s32.totalorder %s14, 1
    %p74 = por %p72, %p73
    %p75 = scmp.ne.s32.totalorder %s66, %s67
    %p76 = scmp.eq.s32.totalorder %s14, 0
    %p77 = por %p75, %p76
    %p78 = scmp.ne.s32.totalorder %s66, %s67
    %p79 = scmp.eq.s32.totalorder %s15, 1
    %p80 = por %p78, %p79
    %p82 = scmp.ne.s32.totalorder %s67, %s81
    %p83 = scmp.eq.s32.totalorder %s15, 0
    %p84 = por %p82, %p83
    %s85 = ssub.s32 %s9, %s16
    %p86 = scmp.eq.s32.totalorder %s85, 0
    %s88 = sadd.s32 %s87, 1
    %s89 = scalar_select %p86, %s87, %s88
    %p92 = pneg %p86
    %p93 = scmp.eq.s32.totalorder %s9, 1
    %p94 = por %p92, %p93
    %p95 = scmp.ne.s32.totalorder %s87, %s90
    %p96 = scmp.eq.s32.totalorder %s9, 0
    %p97 = por %p95, %p96
    %p98 = scmp.ne.s32.totalorder %s87, %s90
    %p99 = scmp.eq.s32.totalorder %s14, 1
    %p100 = por %p98, %p99
    %p101 = scmp.ne.s32.totalorder %s90, %s91
    %p102 = scmp.eq.s32.totalorder %s14, 0
    %p103 = por %p101, %p102
    %p104 = scmp.ne.s32.totalorder %s90, %s91
    %p105 = scmp.eq.s32.totalorder %s15, 1
    %p106 = por %p104, %p105
    %p108 = scmp.ne.s32.totalorder %s91, %s107
    %p109 = scmp.eq.s32.totalorder %s15, 0
    %p110 = por %p108, %p109
    %p111 = scmp.le.s32.totalorder 1, %s9
    %p112 = scmp.lt.s32.totalorder %s9, 3
    %p113 = pnand %p111, %p112
    %p114 = pneg %p113
    // Predicated region
    $region9: #{down_block.3} parent=5 // pred_check
      _
    $region10: #{down_block.3} parent=5 // pred_check_branch
      %116 = sbr.rel (%p113) target = $region12
    $region11: #{down_block.3} parent=5 // pred_region
      %s117 = ssub.s32 %s9, 1
      // Predicated region
      $region13: #{down_block.3} parent=11 // pred_check
        %p118 = pneg %p56
      $region14: #{down_block.3} parent=11 // pred_check_branch
        %120 = sbr.rel (%p118) target = $region16
      $region15: #{down_block.3} parent=11 // pred_region
        _
      $region16: #{down_block.3} parent=11 // pred_fallthru
        _
      // Predicated region
      $region17: #{down_block.3} parent=11 // pred_check
        %p121 = pneg %p77
      $region18: #{down_block.3} parent=11 // pred_check_branch
        %123 = sbr.rel (%p121) target = $region20
      $region19: #{down_block.3} parent=11 // pred_region
        _
      $region20: #{down_block.3} parent=11 // pred_fallthru
        _
    $region12: #{down_block.3} parent=5 // pred_fallthru
      _
    %p124 = scmp.lt.s32.totalorder %s9, 2
    // Predicated region
    $region21: #{down_block.3} parent=5 // pred_check
      %p125 = pneg %p124
    $region22: #{down_block.3} parent=5 // pred_check_branch
      %127 = sbr.rel (%p125) target = $region24
    $region23: #{down_block.3} parent=5 // pred_region
      // Predicated region
      $region25: #{down_block.3} parent=23 // pred_check
        %p128 = pneg %p29
      $region26: #{down_block.3} parent=23 // pred_check_branch
        %130 = sbr.rel (%p128) target = $region28
      $region27: #{down_block.3} parent=23 // pred_region
        %p131 = scmp.lt.s32.totalorder %s9, 1
        %s132 = scalar_select %p131, %s9, 1
        %s133 = smul.addr %s132, 8
        %s134 = scalar_lea.vmem %s0, %s133
      $region28: #{down_block.3} parent=23 // pred_fallthru
        _
    $region24: #{down_block.3} parent=5 // pred_fallthru
      _
    %p135 = scmp.le.s32.totalorder 1, %s9
    %p136 = scmp.lt.s32.totalorder %s9, 3
    %p137 = pnand %p135, %p136
    %p138 = pneg %p137
    // Predicated region
    $region29: #{down_block.3} parent=5 // pred_check
      _
    $region30: #{down_block.3} parent=5 // pred_check_branch
      %140 = sbr.rel (%p137) target = $region32
    $region31: #{down_block.3} parent=5 // pred_region
      %s141 = ssub.s32 %s9, 1
      %p142 = scmp.lt.s32.totalorder %s14, 1
      %s143 = scalar_select %p142, %s14, 1
      %s144 = smul.addr %s143, 8
      %s145 = scalar_lea.vmem %s0, %s144
      %p146 = pneg %p35
      %p147 = pneg %p32
      %p148 = pneg %p56
      %p149 = pneg %p53
      %p150 = pneg %p77
      %p151 = pneg %p74
      %p152 = pneg %p103
      %p153 = pneg %p100
      %p154 = scmp.lt.s32.totalorder %s14, 1
      %s155 = scalar_select %p154, %s14, 1
      %s156 = smul.addr %s155, 8
      %s157 = scalar_lea.vmem %s3, %s156
      %p158 = scmp.lt.s32.totalorder %s14, 1
      %s159 = scalar_select %p158, %s14, 1
      %s160 = smul.addr %s159, 8
      %s161 = scalar_lea.vmem %s0, %s160
      %p162 = scmp.lt.s32.totalorder %s14, 1
      %s163 = scalar_select %p162, %s14, 1
      %s164 = smul.addr %s163, 8
      %s165 = scalar_lea.vmem %s3, %s164
      %v166 = vld [vmem:[%s161] sm:$0xff]
      %v167 = vld [vmem:[%s1] sm:$0xff]
      %169 = vset.pattern.permute.xlu0 0
      %170 = vperm.xlu0 %169, %v167
      %v171 = vpop.permute.xlu0 %170
      %v173 = vmul.f32 %v166, %v171
      %v174 = vld [vmem:[%s2] sm:$0xff]
      %176 = vset.pattern.permute.xlu0 0
      %177 = vperm.xlu0 %176, %v174
      %v178 = vpop.permute.xlu0 %177
      %v180 = vadd.f32 %v173, %v178
      %vm181 = vcmp.ge.f32.partialorder %v180, 0.0
      %v182 = vmul.f32 %v180, 0.2
      %v183 = vsel %vm181, %v180, %v182
      %vm184 = vcmask 523264
      %185 = vst.msk [vmem:[%s165] sm:$0xff] %vm184, %v183
      %p186 = scmp.lt.s32.totalorder %s14, 1
      %s187 = scalar_select %p186, %s14, 1
      %s188 = smul.addr %s187, 8
      %s189 = scalar_lea.vmem %s3, %s188
      // Predicated region
      $region33: #{down_block.3} parent=31 // pred_check
        %p190 = pneg %p100
      $region34: #{down_block.3} parent=31 // pred_check_branch
        %192 = sbr.rel (%p190) target = $region36
      $region35: #{down_block.3} parent=31 // pred_region
        _
      $region36: #{down_block.3} parent=31 // pred_fallthru
        _
    $region32: #{down_block.3} parent=5 // pred_fallthru
      _
    %p193 = scmp.le.s32.totalorder 2, %s9
    // Predicated region
    $region37: #{down_block.3} parent=5 // pred_check
      %p194 = pneg %p193
    $region38: #{down_block.3} parent=5 // pred_check_branch
      %196 = sbr.rel (%p194) target = $region40
    $region39: #{down_block.3} parent=5 // pred_region
      %s197 = ssub.s32 %s9, 2
      // Predicated region
      $region41: #{down_block.3} parent=39 // pred_check
        %p198 = pneg %p106
      $region42: #{down_block.3} parent=39 // pred_check_branch
        %200 = sbr.rel (%p198) target = $region44
      $region43: #{down_block.3} parent=39 // pred_region
        %p201 = scmp.lt.s32.totalorder %s15, 1
        %s202 = scalar_select %p201, %s15, 1
        %s203 = smul.addr %s202, 8
        %s204 = scalar_lea.vmem %s3, %s203
      $region44: #{down_block.3} parent=39 // pred_fallthru
        _
    $region40: #{down_block.3} parent=5 // pred_fallthru
      _
  $region6: #{down_block.3} parent=0 // loop_footer
    %s13 = sadd.s32 1, %s9
  $region7: #{down_block.3} parent=0 // loop_footer_branch
    %8 = sbr.rel target = $region3
  $region8: #{down_block.3} parent=0 // loop_exit
    _

</llo_original>
